<compile_context>
chip_gen: v7x
topology: tpu7x:2x2x1
jax: 0.10.0
libtpu: 0.0.40
codegen_flags: <defaults>
</compile_context>

<pallas_src>
import functools

import jax
import jax.numpy as jnp
from jax.experimental import pallas as pl
from jax.experimental.pallas import tpu as pltpu


def _logits_to_predicate_kernel(x_ref, wt_ref, bt_ref, lt_ref, o_ref):
    # x_ref : (tb, H_pad)     batch tile, hidden on lanes
    # wt_ref: (C_pad, H_pad)  transposed weight (resident across the grid)
    # bt_ref: (C_pad, 1)      transposed bias   (resident; padded rows = -1e30)
    # lt_ref: (C_pad, tb)     transposed label tile, batch on lanes
    # o_ref : (1, tb)         lane-dense output row
    #
    # logits^T[c, b] = sum_h W^T[c, h] * x[b, h]   (A @ B^T contraction — the
    # same trans_b MXU pattern flash attention uses for Q @ K^T; no transpose
    # is materialized in the kernel).
    logits_t = jax.lax.dot_general(
        wt_ref[...], x_ref[...],
        dimension_numbers=(((1,), (1,)), ((), ())),
        preferred_element_type=jnp.float32,
    ) + bt_ref[...]                                           # (C_pad, tb)

    # Numerically-stable softmax over the class (sublane) axis fused with the
    # label-weighted sum: out = sum_c softmax(logits)_c * l_c = sum(e*l)/sum(e)
    m = jnp.max(logits_t, axis=0, keepdims=True)              # (1, tb)
    e = jnp.exp(logits_t - m)                                 # (C_pad, tb)
    num = jnp.sum(e * lt_ref[...], axis=0, keepdims=True)     # (1, tb)
    den = jnp.sum(e, axis=0, keepdims=True)                   # (1, tb)
    o_ref[...] = num / den        # exact division: strict softmax parity


def _round_up(v, m):
    return (v + m - 1) // m * m


def _tile_vmem_bytes(rows, cols, itemsize=4):
    """Physical VMEM footprint of one (rows, cols) f32 tile: last dim padded
    to 128 lanes, second-to-last to 8 sublanes."""
    return _round_up(rows, 8) * _round_up(cols, 128) * itemsize


@functools.lru_cache(maxsize=None)
def _vmem_policy():
    """(budget_bytes, cap_bytes).  v5e/v6e have 128 MiB VMEM, v7x 64 MiB/TC.
    Falls back to the v7x-safe numbers if the query is unavailable."""
    try:
        cap = int(pltpu.get_tpu_info().vmem_capacity_bytes)
    except Exception:
        cap = 64 * 1024 * 1024
    return (cap * 3) // 4, cap        # 48 MiB budget on v7x, 96 MiB on v5e/v6e


def _pick_tb(n_rows, h_pad, c_pad, vmem_budget):
    """Largest batch tile in {128,...,4096} whose double-buffered blocks plus
    resident W^T / b fit the VMEM budget.  The `n_rows >= 2*cand` gate keeps
    at least two grid steps so the parallel grid axis can feed both
    TensorCores on v7x (on single-TC v5e/v6e it only bites for small B)."""
    tb = 128
    for cand in (256, 512, 1024, 2048, 4096):
        per_step = (_tile_vmem_bytes(cand, h_pad)       # x tile
                    + _tile_vmem_bytes(c_pad, cand)     # l^T tile
                    + _tile_vmem_bytes(1, cand))        # output row
        resident = _tile_vmem_bytes(c_pad, h_pad) + _tile_vmem_bytes(c_pad, 1)
        if 2 * (per_step + resident) <= vmem_budget and n_rows >= 2 * cand:
            tb = cand
    return tb


@jax.jit
def logits_to_predicate(x, w, b, l):
    """Pallas TPU implementation of LogitsToPredicate.forward(x, l) with a
    Linear logits_model (weight w: (H, C), bias b: (C,)).

    x: (B, H) f32, l: (B, C) f32  ->  (B,) f32
    """
    B, H = x.shape
    C = w.shape[1]

    c_pad = _round_up(C, 8)     # classes live on the sublane axis -> 8-align
    h_pad = _round_up(H, 8)
    vmem_budget, vmem_cap = _vmem_policy()
    tb = _pick_tb(B, h_pad, c_pad, vmem_budget)
    b_rows = _round_up(max(B, tb), tb)
    grid = b_rows // tb

    # --- layout plumbing: pad / transpose only when actually needed ---------
    xf = x.astype(jnp.float32)
    x_p = xf if (b_rows == B and h_pad == H) else jnp.pad(
        xf, ((0, b_rows - B), (0, h_pad - H)))

    wt = w.astype(jnp.float32).T                       # (C, H)
    wt_p = wt if (c_pad == C and h_pad == H) else jnp.pad(
        wt, ((0, c_pad - C), (0, h_pad - H)))          # padded rows stay zero

    bt = b.astype(jnp.float32).reshape(C, 1)
    # Padded classes get bias -1e30 -> exp() == 0, so they never contribute to
    # the softmax denominator (their W^T rows above are zero).
    bt_p = bt if c_pad == C else jnp.pad(
        bt, ((0, c_pad - C), (0, 0)), constant_values=-1e30)

    lt = l.astype(jnp.float32).T                       # (C, B)
    lt_p = lt if (c_pad == C and b_rows == B) else jnp.pad(
        lt, ((0, c_pad - C), (0, b_rows - B)))

    # VMEM actually used (double-buffered blocks + resident params), with
    # lane/sublane padding accounted for.
    per_step = (_tile_vmem_bytes(tb, h_pad) + _tile_vmem_bytes(c_pad, tb)
                + _tile_vmem_bytes(1, tb))
    resident = _tile_vmem_bytes(c_pad, h_pad) + _tile_vmem_bytes(c_pad, 1)
    vmem_need = 2 * (per_step + resident)
    vmem_limit = int(min((vmem_cap * 9) // 10,
                         max(2 * vmem_need, 32 * 1024 * 1024)))

    out2d = pl.pallas_call(
        _logits_to_predicate_kernel,
        out_shape=jax.ShapeDtypeStruct((1, b_rows), jnp.float32),
        grid=(grid,),
        in_specs=[
            pl.BlockSpec((tb, h_pad), lambda i: (i, 0)),      # x tile over batch
            pl.BlockSpec((c_pad, h_pad), lambda i: (0, 0)),   # W^T resident
            pl.BlockSpec((c_pad, 1), lambda i: (0, 0)),       # b^T resident
            pl.BlockSpec((c_pad, tb), lambda i: (0, i)),      # l^T tile over batch
        ],
        out_specs=pl.BlockSpec((1, tb), lambda i: (0, i)),    # lane-dense row
        compiler_params=pltpu.CompilerParams(
            dimension_semantics=("parallel",),
            vmem_limit_bytes=vmem_limit,
        ),
        cost_estimate=pl.CostEstimate(
            flops=2 * b_rows * h_pad * c_pad + 6 * b_rows * c_pad,
            transcendentals=b_rows * c_pad,
            bytes_accessed=4 * (b_rows * h_pad + c_pad * h_pad + c_pad
                                + c_pad * b_rows + b_rows),
        ),
    )(x_p, wt_p, bt_p, lt_p)
    return out2d[0, :B]


def _reference(x, w, b, l):
    # Full-precision XLA reference (HIGHEST keeps the f32 matmul from being
    # demoted to bf16 passes on TPU at default matmul precision).
    logits = jnp.dot(x, w, precision=jax.lax.Precision.HIGHEST) + b
    probs = jax.nn.softmax(logits, axis=1)
    return jnp.sum(probs * l, axis=1)


if __name__ == "__main__":
    key = jax.random.PRNGKey(0)

    # --- case 1: small shapes implied by the module (B=8, H=32, C=8) --------
    B, H, C = 8, 32, 8
    kx, kw, kb, kl, key = jax.random.split(key, 5)
    x = jax.random.normal(kx, (B, H), dtype=jnp.float32)
    w = jax.random.normal(kw, (H, C), dtype=jnp.float32) * (1.0 / jnp.sqrt(H))
    bias = jax.random.normal(kb, (C,), dtype=jnp.float32) * 0.01
    lbl = jax.nn.one_hot(jax.random.randint(kl, (B,), 0, C), C,
                         dtype=jnp.float32)

    out = jax.block_until_ready(logits_to_predicate(x, w, bias, lbl))
    ref = _reference(x, w, bias, lbl)
    assert out.shape == (B,)
    # Tolerance covers TPU matmul-precision differences between the fused
    # kernel and the XLA reference (f32 dots may use bf16 passes at default
    # precision); a structural bug would be orders of magnitude larger.
    err = float(jnp.max(jnp.abs(out - ref)))
    assert jnp.allclose(out, ref, atol=5e-3, rtol=5e-3), f"case1 max err {err}"

    # --- case 2: ragged shapes (B not a tile multiple, C/H unaligned) -------
    B2, H2, C2 = 300, 33, 10
    kx, kw, kb, kl, key = jax.random.split(key, 5)
    x2 = jax.random.normal(kx, (B2, H2), dtype=jnp.float32)
    w2 = jax.random.normal(kw, (H2, C2), dtype=jnp.float32) * (1.0 / jnp.sqrt(H2))
    bias2 = jax.random.normal(kb, (C2,), dtype=jnp.float32) * 0.01
    lbl2 = jax.nn.one_hot(jax.random.randint(kl, (B2,), 0, C2), C2,
                          dtype=jnp.float32)

    out2 = jax.block_until_ready(logits_to_predicate(x2, w2, bias2, lbl2))
    ref2 = _reference(x2, w2, bias2, lbl2)
    assert out2.shape == (B2,)
    err2 = float(jnp.max(jnp.abs(out2 - ref2)))
    assert jnp.allclose(out2, ref2, atol=5e-3, rtol=5e-3), f"case2 max err {err2}"

    print("KERNEL_OK")
</pallas_src>

<mosaic_0001>
module attributes {stable_mosaic.version = 11 : i64} {
  func.func @_logits_to_predicate_kernel(%arg0: i32, %arg1: memref<128x32xf32, #tpu.memory_space<vmem>>, %arg2: memref<8x32xf32, #tpu.memory_space<vmem>>, %arg3: memref<8x1xf32, #tpu.memory_space<vmem>>, %arg4: memref<8x128xf32, #tpu.memory_space<vmem>>, %arg5: memref<1x128xf32, #tpu.memory_space<vmem>>) attributes {dimension_semantics = [#tpu.dimension_semantics<parallel>], iteration_bounds = array<i64: 1>, scalar_prefetch = 0 : i64, scratch_operands = 0 : i64, tpu.core_type = #tpu.core_type<tc>, window_params = [{transform_indices = @transform_0, window_bounds = array<i64: 128, 32>}, {pipeline_mode = #tpu.pipeline_mode<synchronous>, transform_indices = @transform_1, window_bounds = array<i64: 8, 32>}, {pipeline_mode = #tpu.pipeline_mode<synchronous>, transform_indices = @transform_2, window_bounds = array<i64: 8, 1>}, {transform_indices = @transform_3, window_bounds = array<i64: 8, 128>}, {transform_indices = @transform_4, window_bounds = array<i64: 1, 128>}]} {
    %c0 = arith.constant 0 : index
    %c0_0 = arith.constant 0 : index
    %0 = vector.load %arg2[%c0, %c0_0] : memref<8x32xf32, #tpu.memory_space<vmem>>, vector<8x32xf32>
    %c0_1 = arith.constant 0 : index
    %c0_2 = arith.constant 0 : index
    %1 = vector.load %arg1[%c0_1, %c0_2] : memref<128x32xf32, #tpu.memory_space<vmem>>, vector<128x32xf32>
    %cst = arith.constant dense<0.000000e+00> : vector<8x128xf32>
    %2 = tpu.matmul %0, %1, %cst {dimension_numbers = #tpu.dot_dimension_numbers<[1], [1], [0], [0], [0, 0, 1, 0], [], []>} : vector<8x32xf32>, vector<128x32xf32>, vector<8x128xf32> -> vector<8x128xf32>
    %c0_3 = arith.constant 0 : index
    %c0_4 = arith.constant 0 : index
    %3 = vector.load %arg3[%c0_3, %c0_4] : memref<8x1xf32, #tpu.memory_space<vmem>>, vector<8x1xf32>
    %4 = vector.broadcast %3 : vector<8x1xf32> to vector<8x128xf32>
    %5 = arith.addf %2, %4 : vector<8x128xf32>
    %cst_5 = arith.constant dense<0xFF800000> : vector<128xf32>
    %6 = vector.multi_reduction <maximumf>, %5, %cst_5 [0] : vector<8x128xf32> to vector<128xf32>
    %7 = vector.shape_cast %6 : vector<128xf32> to vector<1x128xf32>
    %8 = vector.broadcast %7 : vector<1x128xf32> to vector<8x128xf32>
    %9 = arith.subf %5, %8 : vector<8x128xf32>
    %10 = math.exp %9 : vector<8x128xf32>
    %c0_6 = arith.constant 0 : index
    %c0_7 = arith.constant 0 : index
    %11 = vector.load %arg4[%c0_6, %c0_7] : memref<8x128xf32, #tpu.memory_space<vmem>>, vector<8x128xf32>
    %12 = arith.mulf %10, %11 : vector<8x128xf32>
    %cst_8 = arith.constant dense<0.000000e+00> : vector<128xf32>
    %13 = vector.multi_reduction <add>, %12, %cst_8 [0] : vector<8x128xf32> to vector<128xf32>
    %14 = vector.shape_cast %13 : vector<128xf32> to vector<1x128xf32>
    %cst_9 = arith.constant dense<0.000000e+00> : vector<128xf32>
    %15 = vector.multi_reduction <add>, %10, %cst_9 [0] : vector<8x128xf32> to vector<128xf32>
    %16 = vector.shape_cast %15 : vector<128xf32> to vector<1x128xf32>
    %17 = arith.divf %14, %16 : vector<1x128xf32>
    %c0_10 = arith.constant 0 : index
    %c0_11 = arith.constant 0 : index
    %18 = vector.load %arg5[%c0_10, %c0_11] : memref<1x128xf32, #tpu.memory_space<vmem>>, vector<1x128xf32>
    tpu.vector_store %arg5[%c0_10, %c0_11], %17 {strides = array<i32>} : memref<1x128xf32, #tpu.memory_space<vmem>>, vector<1x128xf32>,
    return
  }
  func.func @transform_0(%arg0: i32) -> (i32, i32) {
    %c0_i32 = arith.constant 0 : i32
    %c0_i32_0 = arith.constant 0 : i32
    return %arg0, %c0_i32 : i32, i32
  }
  func.func @transform_1(%arg0: i32) -> (i32, i32) {
    %c0_i32 = arith.constant 0 : i32
    %c0_i32_0 = arith.constant 0 : i32
    %c0_i32_1 = arith.constant 0 : i32
    return %c0_i32, %c0_i32_0 : i32, i32
  }
  func.func @transform_2(%arg0: i32) -> (i32, i32) {
    %c0_i32 = arith.constant 0 : i32
    %c0_i32_0 = arith.constant 0 : i32
    %c0_i32_1 = arith.constant 0 : i32
    return %c0_i32, %c0_i32_0 : i32, i32
  }
  func.func @transform_3(%arg0: i32) -> (i32, i32) {
    %c0_i32 = arith.constant 0 : i32
    %c0_i32_0 = arith.constant 0 : i32
    return %c0_i32, %arg0 : i32, i32
  }
  func.func @transform_4(%arg0: i32) -> (i32, i32) {
    %c0_i32 = arith.constant 0 : i32
    %c0_i32_0 = arith.constant 0 : i32
    return %c0_i32, %arg0 : i32, i32
  }
}

</mosaic_0001>

<llo_original>
// kernel: logits_to_predicate.1
$region0: #{logits_to_predicate.1}
  #allocation0 [shape = 'u32[]', space=smem, size = 0x4, offset = 0x4, fixed_abs, tag = 'smem constant byte address 0x4 - core index']
  #allocation1 [shape = 'u32[144,128]{1,0:T(1,128)}', space=vmem, size = 0x12000, scoped, tag = 'internal scratch']
  %s0 = inlined_call_operand.vmem [shape: f32[128,32], index: 0, kind: input, shape index: {}]
  %s1 = inlined_call_operand.vmem [shape: f32[8,32], index: 1, kind: input, shape index: {}]
  %s2 = inlined_call_operand.vmem [shape: f32[8,1], index: 2, kind: input, shape index: {}]
  %s3 = inlined_call_operand.vmem [shape: f32[8,128], index: 3, kind: input, shape index: {}]
  %s4 = inlined_call_operand.vmem [shape: f32[1,128], index: 4, kind: output, shape index: {}]
  %s5 = sld [smem:[#allocation0]]
  $region26: #{logits_to_predicate.1} parent=0
    _
  %s7 = ssub.s32 1, %s5
  %s8 = scalar_select 0, %s7, %s5
  // Predicated region
  $region2: #{logits_to_predicate.1} parent=0 // pred_check
    _
  $region3: #{logits_to_predicate.1} parent=0 // pred_check_branch
    %10 = sbr.rel (0) target = $region5
  $region4: #{logits_to_predicate.1} parent=0 // pred_region
    _
  $region5: #{logits_to_predicate.1} parent=0 // pred_fallthru
    _
  // Predicated region
  $region6: #{logits_to_predicate.1} parent=0 // pred_check
    _
  $region7: #{logits_to_predicate.1} parent=0 // pred_check_branch
    %12 = sbr.rel (0) target = $region9
  $region8: #{logits_to_predicate.1} parent=0 // pred_region
    _
  $region9: #{logits_to_predicate.1} parent=0 // pred_fallthru
    _
  // Predicated region
  $region10: #{logits_to_predicate.1} parent=0 // pred_check
    _
  $region11: #{logits_to_predicate.1} parent=0 // pred_check_branch
    %14 = sbr.rel (0) target = $region13
  $region12: #{logits_to_predicate.1} parent=0 // pred_region
    _
  $region13: #{logits_to_predicate.1} parent=0 // pred_fallthru
    _
  // Predicated region
  $region14: #{logits_to_predicate.1} parent=0 // pred_check
    _
  $region15: #{logits_to_predicate.1} parent=0 // pred_check_branch
    %16 = sbr.rel (0) target = $region17
  $region16: #{logits_to_predicate.1} parent=0 // pred_region
    _
  $region17: #{logits_to_predicate.1} parent=0 // pred_fallthru
    _
  %v17 = vld [vmem:[%s1] sm:$0xff]
  %v18 = vld [vmem:[%s0] sm:$0xff]
  %v19 = vld [vmem:[%s0 + $0x8] sm:$0xff]
  %v20 = vld [vmem:[%s0 + $0x10] sm:$0xff]
  %v21 = vld [vmem:[%s0 + $0x18] sm:$0xff]
  %v22 = vld [vmem:[%s0 + $0x20] sm:$0xff]
  %v23 = vld [vmem:[%s0 + $0x28] sm:$0xff]
  %v24 = vld [vmem:[%s0 + $0x30] sm:$0xff]
  %v25 = vld [vmem:[%s0 + $0x38] sm:$0xff]
  %v26 = vld [vmem:[%s0 + $0x40] sm:$0xff]
  %v27 = vld [vmem:[%s0 + $0x48] sm:$0xff]
  %v28 = vld [vmem:[%s0 + $0x50] sm:$0xff]
  %v29 = vld [vmem:[%s0 + $0x58] sm:$0xff]
  %v30 = vld [vmem:[%s0 + $0x60] sm:$0xff]
  %v31 = vld [vmem:[%s0 + $0x68] sm:$0xff]
  %v32 = vld [vmem:[%s0 + $0x70] sm:$0xff]
  %v33 = vld [vmem:[%s0 + $0x78] sm:$0xff]
  %v34 = vld [vmem:[%s2] sm:$0xff]
  %36 = vset.pattern.permute.xlu0 0
  %37 = vperm.xlu0 %36, %v34
  %v38 = vpop.permute.xlu0 %37
  %vm40 = vcmask 261120
  %v42 = vsel %vm40, %v17, 0
  %v45 = vsel %vm40, %v18, 0
  %v48 = vsel %vm40, %v19, 0
  %v51 = vsel %vm40, %v20, 0
  %v54 = vsel %vm40, %v21, 0
  %v57 = vsel %vm40, %v22, 0
  %v60 = vsel %vm40, %v23, 0
  %v63 = vsel %vm40, %v24, 0
  %v66 = vsel %vm40, %v25, 0
  %v69 = vsel %vm40, %v26, 0
  %v72 = vsel %vm40, %v27, 0
  %v75 = vsel %vm40, %v28, 0
  %v78 = vsel %vm40, %v29, 0
  %v81 = vsel %vm40, %v30, 0
  %v84 = vsel %vm40, %v31, 0
  %v87 = vsel %vm40, %v32, 0
  %v90 = vsel %vm40, %v33, 0
  %92 = vmatprep.subr.mxu0 0.0
  %93 = vmatpush1.xpose.msra.mxu0 %v45
  %94 = vmatprep.subr.mxu0 0.0
  %95 = vmatpush1.xpose.msra.mxu0 %v48
  %96 = vmatprep.subr.mxu0 0.0
  %97 = vmatpush1.xpose.msra.mxu0 %v51
  %98 = vmatprep.subr.mxu0 0.0
  %99 = vmatpush1.xpose.msra.mxu0 %v54
  %100 = vmatprep.subr.mxu0 0.0
  %101 = vmatpush1.xpose.msra.mxu0 %v57
  %102 = vmatprep.subr.mxu0 0.0
  %103 = vmatpush1.xpose.msra.mxu0 %v60
  %104 = vmatprep.subr.mxu0 0.0
  %105 = vmatpush1.xpose.msra.mxu0 %v63
  %106 = vmatprep.subr.mxu0 0.0
  %107 = vmatpush1.xpose.msra.mxu0 %v66
  %108 = vmatprep.subr.mxu0 0.0
  %109 = vmatpush1.xpose.msra.mxu0 %v69
  %110 = vmatprep.subr.mxu0 0.0
  %111 = vmatpush1.xpose.msra.mxu0 %v72
  %112 = vmatprep.subr.mxu0 0.0
  %113 = vmatpush1.xpose.msra.mxu0 %v75
  %114 = vmatprep.subr.mxu0 0.0
  %115 = vmatpush1.xpose.msra.mxu0 %v78
  %116 = vmatprep.subr.mxu0 0.0
  %117 = vmatpush1.xpose.msra.mxu0 %v81
  %118 = vmatprep.subr.mxu0 0.0
  %119 = vmatpush1.xpose.msra.mxu0 %v84
  %120 = vmatprep.subr.mxu0 0.0
  %121 = vmatpush1.xpose.msra.mxu0 %v87
  %122 = vmatprep.subr.mxu0 0.0
  %123 = vmatpush1.xpose.msra.mxu0 %v90
  %124 = vmatprep.subr.mxu0 0.0
  %125 = vmatpush1.xpose.msra.mxu0 0.0
  %126 = vmatprep.subr.mxu0 0.0
  %127 = vmatpush1.xpose.msra.mxu0 0.0
  %128 = vmatprep.subr.mxu0 0.0
  %129 = vmatpush1.xpose.msra.mxu0 0.0
  %130 = vmatprep.subr.mxu0 0.0
  %131 = vmatpush1.xpose.msra.mxu0 0.0
  %132 = vmatprep.subr.mxu0 0.0
  %133 = vmatpush1.xpose.msra.mxu0 0.0
  %134 = vmatprep.subr.mxu0 0.0
  %135 = vmatpush1.xpose.msra.mxu0 0.0
  %136 = vmatprep.subr.mxu0 0.0
  %137 = vmatpush1.xpose.msra.mxu0 0.0
  %138 = vmatprep.subr.mxu0 0.0
  %139 = vmatpush1.xpose.msra.mxu0 0.0
  %140 = vmatprep.subr.mxu0 0.0
  %141 = vmatpush1.xpose.msra.mxu0 0.0
  %142 = vmatprep.subr.mxu0 0.0
  %143 = vmatpush1.xpose.msra.mxu0 0.0
  %144 = vmatprep.subr.mxu0 0.0
  %145 = vmatpush1.xpose.msra.mxu0 0.0
  %146 = vmatprep.subr.mxu0 0.0
  %147 = vmatpush1.xpose.msra.mxu0 0.0
  %148 = vmatprep.subr.mxu0 0.0
  %149 = vmatpush1.xpose.msra.mxu0 0.0
  %150 = vmatprep.subr.mxu0 0.0
  %151 = vmatpush1.xpose.msra.mxu0 0.0
  %152 = vmatprep.subr.mxu0 0.0
  %153 = vmatpush1.xpose.msra.mxu0 0.0
  %154 = vmatprep.subr.mxu0 0.0
  %155 = vmatpush1.xpose.msra.mxu0 0.0
  %156 = vmatprep.mubr.f32.mxu0 0.0
  %157 = vmatmul.mubr.f32.gmra.mrb[0].mxu0 %v42
  %v158 = vpop.f32.mrb[0].mxu0
  %v159 = vadd.f32 %v38, %v158
  %v160 = vpop.f32.mrb[0].mxu0
  %161 = vdwg.mxu0
  %v162 = vrot.slane %v159, 4
  %v163 = vmax.f32 %v159, %v162
  %v164 = vrot.slane %v163, 2
  %v165 = vmax.f32 %v163, %v164
  %v166 = vrot.slane %v165, 1
  %v167 = vmax.f32 %v165, %v166
  %v168 = vsub.f32 %v159, %v167
  %v169 = vmul.f32 %v168, 1.442695
  %v170 = vpow.pop %v169
  %v171 = vld [vmem:[%s3] sm:$0xff]
  %v172 = vmul.f32 %v170, %v171
  %v173 = vrot.slane %v172, 4
  %v174 = vadd.f32 %v172, %v173
  %v175 = vrot.slane %v174, 2
  %v176 = vadd.f32 %v174, %v175
  %v177 = vrot.slane %v176, 1
  %v178 = vadd.f32 %v176, %v177
  %v179 = vrot.slane %v170, 4
  %v180 = vadd.f32 %v170, %v179
  %v181 = vrot.slane %v180, 2
  %v182 = vadd.f32 %v180, %v181
  %v183 = vrot.slane %v182, 1
  %v184 = vadd.f32 %v182, %v183
  %v185 = vrcp.pop %v184
  %v186 = vmul.f32 %v178, %v185
  %187 = vst [vmem:[%s4] sm:$0x1] %v186
  // Predicated region
  $region18: #{logits_to_predicate.1} parent=0 // pred_check
    _
  $region19: #{logits_to_predicate.1} parent=0 // pred_check_branch
    %189 = sbr.rel (0) target = $region21
  $region20: #{logits_to_predicate.1} parent=0 // pred_region
    _
  $region21: #{logits_to_predicate.1} parent=0 // pred_fallthru
    _
  // Predicated region
  $region22: #{logits_to_predicate.1} parent=0 // pred_check
    _
  $region23: #{logits_to_predicate.1} parent=0 // pred_check_branch
    %191 = sbr.rel (0) target = $region25
  $region24: #{logits_to_predicate.1} parent=0 // pred_region
    _
  $region25: #{logits_to_predicate.1} parent=0 // pred_fallthru
    _

</llo_original>
